<compile_context>
chip_gen: v5e
topology: v5e:2x2
jax: 0.10.0
libtpu: 0.0.40
codegen_flags: <defaults>
</compile_context>

<pallas_src>
import functools
import math

import jax
import jax.numpy as jnp
from jax.experimental import pallas as pl
from jax.experimental.pallas import tpu as pltpu

LANES = 128
CHUNK_ROWS = 1024                      # compute strip inside a tile (bounds VMEM live set)
MAX_TILE_ROWS = 8192                   # 8192*128*4 B = 4 MiB per f32 input DMA block
INPUT_VMEM_BUDGET = 24 * 1024 * 1024   # 2 inputs x 2 buffers must stay under this
VMEM_LIMIT_BYTES = 32 * 1024 * 1024    # explicit scoped-VMEM limit, safe on v5e..v7x
NSPLIT_MAX = 2                         # leading "parallel" axis for v7x 2-TC sharding


def _round_up(a, b):
    return ((a + b - 1) // b) * b


def _sublane_multiple(dtype):
    itemsize = jnp.dtype(dtype).itemsize
    return max(8, 32 // max(1, itemsize))     # f32 -> 8, bf16 -> 16, int8 -> 32


def _int_pow(base, gi):
    if gi == 0:
        return jnp.ones_like(base)
    r = base
    for _ in range(gi - 1):
        r = r * base
    return r


def _focal_sums_kernel(x_ref, t_ref, out_ref, *,
                       gamma, clip_val, tile_rows, chunk_rows, num_chunks,
                       tiles_per_split, total_rows, binary_target, has_boundary):
    s = pl.program_id(0)      # split / TensorCore axis ("parallel")
    i = pl.program_id(1)      # reduction axis ("arbitrary")

    @pl.when(i == 0)
    def _():
        out_ref[...] = jnp.zeros_like(out_ref)

    # Global (UNclamped) row offset this grid step is logically responsible for.
    row_start = (s * tiles_per_split + i) * tile_rows

    def fold(v):
        # (chunk_rows, 128) -> (8, 128) partial sum: pure vreg adds, no XLU.
        return v.reshape(chunk_rows // 8, 8, LANES).sum(axis=0)

    def accumulate(x, pos_f, neg_f, count_neg):
        # clamp(sigmoid(x), smooth, 1-smooth) == sigmoid(clamp(x, -C, C)) with
        # C = log((1-smooth)/smooth): one exp + one log (+ one approx recip on
        # the integer-gamma path) per element.
        xc = jnp.clip(x, -clip_val, clip_val)
        u = jnp.exp(-jnp.abs(xc))                            # EUP
        one_p_u = 1.0 + u
        log_p = jnp.minimum(xc, 0.0) - jnp.log(one_p_u)      # log(prob), EUP
        log_1mp = log_p - xc                                 # log(1 - prob)

        if float(gamma) == int(gamma) and 0 <= int(gamma) <= 8:
            gi = int(gamma)
            inv = pl.reciprocal(one_p_u, approx=True)        # cheap EUP recip
            prob = jnp.where(xc >= 0.0, inv, u * inv)        # sigmoid(xc)
            pow_1mp = _int_pow(1.0 - prob, gi)               # VPU multiplies
            pow_p = _int_pow(prob, gi)
        else:
            pow_1mp = jnp.exp(gamma * log_1mp)               # (1-prob)**gamma
            pow_p = jnp.exp(gamma * log_p)                   # prob**gamma

        # alpha / negation are applied once host-side (hoisted out of the sum).
        out_ref[0, 0] += fold(pow_1mp * log_p * pos_f)
        out_ref[0, 1] += fold(pow_p * log_1mp * neg_f)
        out_ref[0, 2] += fold(pos_f)
        if count_neg:
            out_ref[0, 3] += fold(neg_f)

    def run_chunk(x, t, valid):
        xf = x.astype(jnp.float32)
        if valid is not None:
            # Zero garbage rows BEFORE any transcendental so NaN/Inf can never
            # leak through the masked sums (NaN * 0 == NaN).
            xf = jnp.where(valid, xf, 0.0)
        if binary_target:
            pos_f = t.astype(jnp.float32)          # targets are exactly {0, 1}
            if valid is not None:
                valid_f = valid.astype(jnp.float32)
                pos_f = pos_f * valid_f
                neg_f = valid_f - pos_f
            else:
                neg_f = 1.0 - pos_f
            accumulate(xf, pos_f, neg_f, count_neg=False)
        else:
            tf = t.astype(jnp.float32)
            pos_p = tf == 1.0
            neg_p = tf == 0.0
            if valid is not None:
                pos_p = pos_p & valid
                neg_p = neg_p & valid
            accumulate(xf, pos_p.astype(jnp.float32),
                       neg_p.astype(jnp.float32), count_neg=True)

    def process(c):
        r0 = c * chunk_rows
        if not isinstance(r0, int):
            r0 = pl.multiple_of(r0, chunk_rows)
        x = x_ref[pl.ds(r0, chunk_rows), :]
        t = t_ref[pl.ds(r0, chunk_rows), :]

        if not has_boundary:
            run_chunk(x, t, None)          # statically mask-free fast path
            return

        g0 = row_start + r0
        interior = g0 + chunk_rows <= total_rows

        @pl.when(interior)
        def _():
            run_chunk(x, t, None)          # interior chunk: no mask at all

        @pl.when(jnp.logical_not(interior))
        def _():
            row_ids = g0 + jax.lax.broadcasted_iota(
                jnp.int32, (chunk_rows, LANES), 0)
            run_chunk(x, t, row_ids < total_rows)

    if num_chunks == 1:
        process(0)
    else:
        @pl.loop(0, num_chunks)
        def _(c):
            process(c)


def _jnp_raw_sums(x, t, gamma, smooth):
    """Un-negated, un-alpha'd focal sums + counts in plain jnp (tail/fallback)."""
    xf = x.astype(jnp.float32)
    tf = t.astype(jnp.float32)
    prob = jnp.clip(jax.nn.sigmoid(xf), smooth, 1.0 - smooth)
    pos = (tf == 1.0).astype(jnp.float32)
    neg = (tf == 0.0).astype(jnp.float32)
    pos_sum = jnp.sum(jnp.power(1.0 - prob, gamma) * jnp.log(prob) * pos)
    neg_sum = jnp.sum(jnp.power(prob, gamma) * jnp.log(1.0 - prob) * neg)
    return pos_sum, neg_sum, pos.sum(), neg.sum()


def binary_focal_loss(output, target, alpha=(1.0, 1.0), gamma=2.0,
                      ignore_index=None, reduction='mean', binary_target=None):
    """Pallas implementation of BinaryFocalLoss.forward.

    `reduction` / `ignore_index` are stored by the torch module but unused in
    its forward pass; kept only for signature parity.  `binary_target=True`
    asserts target values are exactly {0, 1} (narrower / faster path); it
    defaults to True only for bool targets.
    """
    assert reduction in ('none', 'mean', 'sum')
    smooth = 1e-6
    alpha0, alpha1 = float(alpha[0]), float(alpha[1])
    gamma = float(gamma)
    clip_val = math.log((1.0 - smooth) / smooth)   # ~13.8155

    x_flat = output.reshape(-1)
    t_flat = target.reshape(-1)
    n = x_flat.shape[0]

    if binary_target is None:
        binary_target = (t_flat.dtype == jnp.bool_)
    binary_target = bool(binary_target)
    if binary_target and t_flat.dtype != jnp.int8:
        t_flat = t_flat.astype(jnp.int8)       # narrow wire dtype (HBM bandwidth)

    full_rows = n // LANES
    rem = n - full_rows * LANES

    if full_rows == 0:                         # tiny input: pure jnp
        pos_s, neg_s, num_pos, num_neg = _jnp_raw_sums(x_flat, t_flat, gamma, smooth)
        pos_loss = (-alpha0) * pos_s
        neg_loss = (-alpha1) * neg_s
        return jnp.where(num_pos == 0.0, neg_loss,
                         pos_loss / num_pos + neg_loss / num_neg)

    if rem == 0:
        x2 = x_flat.reshape(full_rows, LANES)  # free (bitcast) reshape
        t2 = t_flat.reshape(full_rows, LANES)
    else:
        # TODO(synk): the aligned-prefix slice still costs one copy of each
        # input when n % 128 != 0; a fully copy-free misaligned path needs a
        # manual-DMA kernel reading the flat HBM ref.
        x2 = x_flat[:full_rows * LANES].reshape(full_rows, LANES)
        t2 = t_flat[:full_rows * LANES].reshape(full_rows, LANES)

    mult = max(_sublane_multiple(x2.dtype), _sublane_multiple(t2.dtype))
    if full_rows <= CHUNK_ROWS:
        tile_rows = _round_up(full_rows, mult)
        chunk_rows = tile_rows
    else:
        tile_rows = min(MAX_TILE_ROWS, _round_up(full_rows, CHUNK_ROWS))
        chunk_rows = CHUNK_ROWS
    # Keep the double-buffered input blocks inside the VMEM budget for any dtype.
    bytes_per_row = 2 * LANES * (jnp.dtype(x2.dtype).itemsize
                                 + jnp.dtype(t2.dtype).itemsize)
    while tile_rows > chunk_rows and tile_rows * bytes_per_row > INPUT_VMEM_BUDGET:
        tile_rows //= 2
    num_chunks = tile_rows // chunk_rows

    total_tiles = pl.cdiv(full_rows, tile_rows)
    # TODO(synk): confirm the size-2 "parallel" axis really shards across the
    # two v7x TensorCores (else switch to pltpu.CORE_PARALLEL / pl.core_map).
    nsplit = NSPLIT_MAX if total_tiles >= NSPLIT_MAX else 1
    tiles_per_split = pl.cdiv(total_tiles, nsplit)
    has_boundary = (nsplit * tiles_per_split * tile_rows) != full_rows
    nacc = 3 if binary_target else 4

    def in_index(s, i):
        b = s * tiles_per_split + i
        return (jnp.minimum(b, total_tiles - 1), 0)   # clamp DMA in-bounds

    kernel = functools.partial(
        _focal_sums_kernel,
        gamma=gamma, clip_val=clip_val, tile_rows=tile_rows,
        chunk_rows=chunk_rows, num_chunks=num_chunks,
        tiles_per_split=tiles_per_split, total_rows=full_rows,
        binary_target=binary_target, has_boundary=has_boundary)

    partials = pl.pallas_call(
        kernel,
        out_shape=jax.ShapeDtypeStruct((nsplit, nacc, 8, LANES), jnp.float32),
        grid_spec=pltpu.PrefetchScalarGridSpec(
            num_scalar_prefetch=0,
            grid=(nsplit, tiles_per_split),
            in_specs=[
                pl.BlockSpec((tile_rows, LANES), in_index),
                pl.BlockSpec((tile_rows, LANES), in_index),
            ],
            out_specs=pl.BlockSpec((1, nacc, 8, LANES),
                                   lambda s, i: (s, 0, 0, 0)),
        ),
        compiler_params=pltpu.CompilerParams(
            dimension_semantics=("parallel", "arbitrary"),
            vmem_limit_bytes=VMEM_LIMIT_BYTES),
    )(x2, t2)

    # Tiny final cross-lane reduction + scalar combine in plain JAX.
    sums = partials.sum(axis=(0, 2, 3))
    pos_sum, neg_sum, num_pos = sums[0], sums[1], sums[2]
    if binary_target:
        num_neg = jnp.float32(full_rows * LANES) - num_pos
    else:
        num_neg = sums[3]

    if rem:   # <128-element tail handled in plain jnp (no pad copy)
        t_ps, t_ns, t_np, t_nn = _jnp_raw_sums(
            x_flat[full_rows * LANES:], t_flat[full_rows * LANES:], gamma, smooth)
        pos_sum = pos_sum + t_ps
        neg_sum = neg_sum + t_ns
        num_pos = num_pos + t_np
        num_neg = num_neg + t_nn

    pos_loss = (-alpha0) * pos_sum
    neg_loss = (-alpha1) * neg_sum
    # torch: if num_pos == 0: loss = neg_loss else pos/num_pos + neg/num_neg
    return jnp.where(num_pos == 0.0, neg_loss,
                     pos_loss / num_pos + neg_loss / num_neg)


def _reference(output, target, alpha=(1.0, 1.0), gamma=2.0):
    smooth = 1e-6
    prob = jax.nn.sigmoid(output.astype(jnp.float32))
    prob = jnp.clip(prob, smooth, 1.0 - smooth)
    t = target.astype(jnp.float32)
    pos_mask = (t == 1.0).astype(jnp.float32)
    neg_mask = (t == 0.0).astype(jnp.float32)
    pos_loss = -alpha[0] * jnp.power(1.0 - prob, gamma) * jnp.log(prob) * pos_mask
    neg_loss = -alpha[1] * jnp.power(prob, gamma) * jnp.log(1.0 - prob) * neg_mask
    num_pos = pos_mask.sum()
    num_neg = neg_mask.sum()
    return jnp.where(num_pos == 0.0, neg_loss.sum(),
                     pos_loss.sum() / num_pos + neg_loss.sum() / num_neg)


if __name__ == "__main__":
    key = jax.random.PRNGKey(0)
    ks = jax.random.split(key, 10)

    # Case 1: canonical NCHW, lane-aligned, integer gamma (approx-recip path),
    # general (no binary contract) float targets.  rtol loosened for the
    # approximate EUP reciprocal.
    logits1 = jax.random.normal(ks[0], (2, 4, 16, 16), dtype=jnp.float32)
    target1 = jax.random.bernoulli(ks[1], 0.3, (2, 4, 16, 16)).astype(jnp.float32)
    out1 = jax.block_until_ready(binary_focal_loss(logits1, target1,
                                                   alpha=(1.0, 1.0), gamma=2.0))
    ref1 = _reference(logits1, target1, alpha=(1.0, 1.0), gamma=2.0)
    assert jnp.allclose(out1, ref1, rtol=5e-3, atol=1e-6), (out1, ref1)

    # Case 2: misaligned element count (jnp tail, masked boundary tile) and
    # non-integer gamma (exp path, no approx ops).
    logits2 = jax.random.normal(ks[2], (3, 5, 7, 11), dtype=jnp.float32)
    target2 = jax.random.bernoulli(ks[3], 0.4, (3, 5, 7, 11)).astype(jnp.float32)
    out2 = jax.block_until_ready(binary_focal_loss(logits2, target2,
                                                   alpha=(0.25, 0.75), gamma=2.5))
    ref2 = _reference(logits2, target2, alpha=(0.25, 0.75), gamma=2.5)
    assert jnp.allclose(out2, ref2, rtol=5e-4, atol=1e-6), (out2, ref2)

    # Case 3: bool target (binary int8 wire path), multi-chunk tile with a
    # masked boundary chunk and mask-free interior chunk.
    logits3 = jax.random.normal(ks[4], (2, 4, 128, 160), dtype=jnp.float32)
    target3 = jax.random.bernoulli(ks[5], 0.2, (2, 4, 128, 160))       # bool
    out3 = jax.block_until_ready(binary_focal_loss(logits3, target3,
                                                   alpha=(0.3, 0.7), gamma=2.0))
    ref3 = _reference(logits3, target3, alpha=(0.3, 0.7), gamma=2.0)
    assert jnp.allclose(out3, ref3, rtol=5e-3, atol=1e-6), (out3, ref3)

    # Case 4: multi-tile grid with the 2-way split axis, float targets under an
    # explicit binary contract (int8 wire), gamma=3 integer-power path.
    logits4 = jax.random.normal(ks[6], (2, 8, 260, 256), dtype=jnp.float32)
    target4 = jax.random.bernoulli(ks[7], 0.5, (2, 8, 260, 256)).astype(jnp.float32)
    out4 = jax.block_until_ready(binary_focal_loss(logits4, target4,
                                                   alpha=(1.0, 2.0), gamma=3.0,
                                                   binary_target=True))
    ref4 = _reference(logits4, target4, alpha=(1.0, 2.0), gamma=3.0)
    assert jnp.allclose(out4, ref4, rtol=5e-3, atol=1e-6), (out4, ref4)

    # Case 5: no positives -> loss must equal the (scaled) negative sum.
    logits5 = jax.random.normal(ks[8], (2, 4, 16, 16), dtype=jnp.float32)
    target5 = jnp.zeros((2, 4, 16, 16), dtype=jnp.float32)
    out5 = jax.block_until_ready(binary_focal_loss(logits5, target5,
                                                   alpha=(1.0, 1.0), gamma=2.0))
    ref5 = _reference(logits5, target5, alpha=(1.0, 1.0), gamma=2.0)
    assert jnp.allclose(out5, ref5, rtol=5e-3, atol=1e-6), (out5, ref5)

    print("KERNEL_OK")
</pallas_src>

<mosaic_0001>
module attributes {stable_mosaic.version = 11 : i64} {
  func.func @_focal_sums_kernel(%arg0: i32, %arg1: i32, %arg2: memref<16x128xf32, #tpu.memory_space<vmem>>, %arg3: memref<16x128xf32, #tpu.memory_space<vmem>>, %arg4: memref<1x4x8x128xf32, #tpu.memory_space<vmem>>) attributes {dimension_semantics = [#tpu.dimension_semantics<parallel>, #tpu.dimension_semantics<arbitrary>], iteration_bounds = array<i64: 1, 1>, scalar_prefetch = 0 : i64, scratch_operands = 0 : i64, tpu.core_type = #tpu.core_type<tc>, window_params = [{transform_indices = @transform_0, window_bounds = array<i64: 16, 128>}, {transform_indices = @transform_1, window_bounds = array<i64: 16, 128>}, {transform_indices = @transform_2, window_bounds = array<i64: 1, 4, 8, 128>}]} {
    %c0_i32 = arith.constant 0 : i32
    %0 = arith.cmpi eq, %arg1, %c0_i32 : i32
    %1 = arith.extui %0 : i1 to i32
    %c0_i32_0 = arith.constant 0 : i32
    %2 = arith.cmpi ne, %1, %c0_i32_0 : i32
    scf.if %2 {
      %cst_45 = arith.constant 0.000000e+00 : f32
      %73 = vector.broadcast %cst_45 : f32 to vector<1x4x8x128xf32>
      %c0_46 = arith.constant 0 : index
      %c0_47 = arith.constant 0 : index
      %c0_48 = arith.constant 0 : index
      %c0_49 = arith.constant 0 : index
      %74 = vector.load %arg4[%c0_46, %c0_47, %c0_48, %c0_49] : memref<1x4x8x128xf32, #tpu.memory_space<vmem>>, vector<1x4x8x128xf32>
      tpu.vector_store %arg4[%c0_46, %c0_47, %c0_48, %c0_49], %73 {strides = array<i32>} : memref<1x4x8x128xf32, #tpu.memory_space<vmem>>, vector<1x4x8x128xf32>,
    } else {
    }
    %c0 = arith.constant 0 : index
    %c0_1 = arith.constant 0 : index
    %3 = vector.load %arg2[%c0, %c0_1] : memref<16x128xf32, #tpu.memory_space<vmem>>, vector<16x128xf32>
    %c0_2 = arith.constant 0 : index
    %c0_3 = arith.constant 0 : index
    %4 = vector.load %arg3[%c0_2, %c0_3] : memref<16x128xf32, #tpu.memory_space<vmem>>, vector<16x128xf32>
    %cst = arith.constant 1.000000e+00 : f32
    %5 = vector.broadcast %cst : f32 to vector<16x128xf32>
    %6 = arith.cmpf oeq, %4, %5 : vector<16x128xf32>
    %cst_4 = arith.constant 0.000000e+00 : f32
    %7 = vector.broadcast %cst_4 : f32 to vector<16x128xf32>
    %8 = arith.cmpf oeq, %4, %7 : vector<16x128xf32>
    %9 = arith.extui %6 : vector<16x128xi1> to vector<16x128xi32>
    %10 = arith.sitofp %9 : vector<16x128xi32> to vector<16x128xf32>
    %11 = arith.extui %8 : vector<16x128xi1> to vector<16x128xi32>
    %12 = arith.sitofp %11 : vector<16x128xi32> to vector<16x128xf32>
    %cst_5 = arith.constant -13.8155098 : f32
    %cst_6 = arith.constant 13.8155098 : f32
    %13 = vector.broadcast %cst_5 : f32 to vector<16x128xf32>
    %14 = arith.maximumf %13, %3 : vector<16x128xf32>
    %15 = vector.broadcast %cst_6 : f32 to vector<16x128xf32>
    %16 = arith.minimumf %15, %14 : vector<16x128xf32>
    %17 = math.absf %16 : vector<16x128xf32>
    %cst_7 = arith.constant 0.000000e+00 : f32
    %18 = vector.broadcast %cst_7 : f32 to vector<16x128xf32>
    %19 = arith.subf %18, %17 : vector<16x128xf32>
    %20 = math.exp %19 : vector<16x128xf32>
    %cst_8 = arith.constant 1.000000e+00 : f32
    %21 = vector.broadcast %cst_8 : f32 to vector<16x128xf32>
    %22 = arith.addf %21, %20 : vector<16x128xf32>
    %cst_9 = arith.constant 0.000000e+00 : f32
    %23 = vector.broadcast %cst_9 : f32 to vector<16x128xf32>
    %24 = arith.minimumf %16, %23 : vector<16x128xf32>
    %25 = math.log %22 : vector<16x128xf32>
    %26 = arith.subf %24, %25 : vector<16x128xf32>
    %27 = arith.subf %26, %16 : vector<16x128xf32>
    %28 = tpu.reciprocal %22 {approx = true} : vector<16x128xf32> -> vector<16x128xf32>
    %cst_10 = arith.constant 0.000000e+00 : f32
    %29 = vector.broadcast %cst_10 : f32 to vector<16x128xf32>
    %30 = arith.cmpf oge, %16, %29 : vector<16x128xf32>
    %31 = arith.mulf %20, %28 : vector<16x128xf32>
    %32 = arith.select %30, %28, %31 : vector<16x128xi1>, vector<16x128xf32>
    %cst_11 = arith.constant 1.000000e+00 : f32
    %33 = vector.broadcast %cst_11 : f32 to vector<16x128xf32>
    %34 = arith.subf %33, %32 : vector<16x128xf32>
    %35 = arith.mulf %34, %34 : vector<16x128xf32>
    %36 = arith.mulf %32, %32 : vector<16x128xf32>
    %c0_12 = arith.constant 0 : index
    %c0_13 = arith.constant 0 : index
    %c0_14 = arith.constant 0 : index
    %c0_15 = arith.constant 0 : index
    %37 = vector.load %arg4[%c0_12, %c0_13, %c0_14, %c0_15] : memref<1x4x8x128xf32, #tpu.memory_space<vmem>>, vector<1x1x8x128xf32>
    %38 = vector.shape_cast %37 : vector<1x1x8x128xf32> to vector<8x128xf32>
    %39 = arith.mulf %35, %26 : vector<16x128xf32>
    %40 = arith.mulf %39, %10 : vector<16x128xf32>
    %41 = vector.shape_cast %40 : vector<16x128xf32> to vector<2x8x128xf32>
    %cst_16 = arith.constant dense<0.000000e+00> : vector<8x128xf32>
    %42 = vector.multi_reduction <add>, %41, %cst_16 [0] : vector<2x8x128xf32> to vector<8x128xf32>
    %43 = arith.addf %38, %42 : vector<8x128xf32>
    %c0_17 = arith.constant 0 : index
    %c0_18 = arith.constant 0 : index
    %c0_19 = arith.constant 0 : index
    %c0_20 = arith.constant 0 : index
    %44 = vector.load %arg4[%c0_17, %c0_18, %c0_19, %c0_20] : memref<1x4x8x128xf32, #tpu.memory_space<vmem>>, vector<1x1x8x128xf32>
    %45 = vector.shape_cast %44 : vector<1x1x8x128xf32> to vector<8x128xf32>
    %46 = vector.shape_cast %43 : vector<8x128xf32> to vector<1x1x8x128xf32>
    tpu.vector_store %arg4[%c0_17, %c0_18, %c0_19, %c0_20], %46 {strides = array<i32>} : memref<1x4x8x128xf32, #tpu.memory_space<vmem>>, vector<1x1x8x128xf32>,
    %c0_21 = arith.constant 0 : index
    %c1 = arith.constant 1 : index
    %c0_22 = arith.constant 0 : index
    %c0_23 = arith.constant 0 : index
    %47 = vector.load %arg4[%c0_21, %c1, %c0_22, %c0_23] : memref<1x4x8x128xf32, #tpu.memory_space<vmem>>, vector<1x1x8x128xf32>
    %48 = vector.shape_cast %47 : vector<1x1x8x128xf32> to vector<8x128xf32>
    %49 = arith.mulf %36, %27 : vector<16x128xf32>
    %50 = arith.mulf %49, %12 : vector<16x128xf32>
    %51 = vector.shape_cast %50 : vector<16x128xf32> to vector<2x8x128xf32>
    %cst_24 = arith.constant dense<0.000000e+00> : vector<8x128xf32>
    %52 = vector.multi_reduction <add>, %51, %cst_24 [0] : vector<2x8x128xf32> to vector<8x128xf32>
    %53 = arith.addf %48, %52 : vector<8x128xf32>
    %c0_25 = arith.constant 0 : index
    %c1_26 = arith.constant 1 : index
    %c0_27 = arith.constant 0 : index
    %c0_28 = arith.constant 0 : index
    %54 = vector.load %arg4[%c0_25, %c1_26, %c0_27, %c0_28] : memref<1x4x8x128xf32, #tpu.memory_space<vmem>>, vector<1x1x8x128xf32>
    %55 = vector.shape_cast %54 : vector<1x1x8x128xf32> to vector<8x128xf32>
    %56 = vector.shape_cast %53 : vector<8x128xf32> to vector<1x1x8x128xf32>
    tpu.vector_store %arg4[%c0_25, %c1_26, %c0_27, %c0_28], %56 {strides = array<i32>} : memref<1x4x8x128xf32, #tpu.memory_space<vmem>>, vector<1x1x8x128xf32>,
    %c0_29 = arith.constant 0 : index
    %c2 = arith.constant 2 : index
    %c0_30 = arith.constant 0 : index
    %c0_31 = arith.constant 0 : index
    %57 = vector.load %arg4[%c0_29, %c2, %c0_30, %c0_31] : memref<1x4x8x128xf32, #tpu.memory_space<vmem>>, vector<1x1x8x128xf32>
    %58 = vector.shape_cast %57 : vector<1x1x8x128xf32> to vector<8x128xf32>
    %59 = vector.shape_cast %10 : vector<16x128xf32> to vector<2x8x128xf32>
    %cst_32 = arith.constant dense<0.000000e+00> : vector<8x128xf32>
    %60 = vector.multi_reduction <add>, %59, %cst_32 [0] : vector<2x8x128xf32> to vector<8x128xf32>
    %61 = arith.addf %58, %60 : vector<8x128xf32>
    %c0_33 = arith.constant 0 : index
    %c2_34 = arith.constant 2 : index
    %c0_35 = arith.constant 0 : index
    %c0_36 = arith.constant 0 : index
    %62 = vector.load %arg4[%c0_33, %c2_34, %c0_35, %c0_36] : memref<1x4x8x128xf32, #tpu.memory_space<vmem>>, vector<1x1x8x128xf32>
    %63 = vector.shape_cast %62 : vector<1x1x8x128xf32> to vector<8x128xf32>
    %64 = vector.shape_cast %61 : vector<8x128xf32> to vector<1x1x8x128xf32>
    tpu.vector_store %arg4[%c0_33, %c2_34, %c0_35, %c0_36], %64 {strides = array<i32>} : memref<1x4x8x128xf32, #tpu.memory_space<vmem>>, vector<1x1x8x128xf32>,
    %c0_37 = arith.constant 0 : index
    %c3 = arith.constant 3 : index
    %c0_38 = arith.constant 0 : index
    %c0_39 = arith.constant 0 : index
    %65 = vector.load %arg4[%c0_37, %c3, %c0_38, %c0_39] : memref<1x4x8x128xf32, #tpu.memory_space<vmem>>, vector<1x1x8x128xf32>
    %66 = vector.shape_cast %65 : vector<1x1x8x128xf32> to vector<8x128xf32>
    %67 = vector.shape_cast %12 : vector<16x128xf32> to vector<2x8x128xf32>
    %cst_40 = arith.constant dense<0.000000e+00> : vector<8x128xf32>
    %68 = vector.multi_reduction <add>, %67, %cst_40 [0] : vector<2x8x128xf32> to vector<8x128xf32>
    %69 = arith.addf %66, %68 : vector<8x128xf32>
    %c0_41 = arith.constant 0 : index
    %c3_42 = arith.constant 3 : index
    %c0_43 = arith.constant 0 : index
    %c0_44 = arith.constant 0 : index
    %70 = vector.load %arg4[%c0_41, %c3_42, %c0_43, %c0_44] : memref<1x4x8x128xf32, #tpu.memory_space<vmem>>, vector<1x1x8x128xf32>
    %71 = vector.shape_cast %70 : vector<1x1x8x128xf32> to vector<8x128xf32>
    %72 = vector.shape_cast %69 : vector<8x128xf32> to vector<1x1x8x128xf32>
    tpu.vector_store %arg4[%c0_41, %c3_42, %c0_43, %c0_44], %72 {strides = array<i32>} : memref<1x4x8x128xf32, #tpu.memory_space<vmem>>, vector<1x1x8x128xf32>,
    return
  }
  func.func @transform_0(%arg0: i32, %arg1: i32) -> (i32, i32) {
    %c1_i32 = arith.constant 1 : i32
    %0 = arith.muli %arg0, %c1_i32 : i32
    %1 = arith.addi %0, %arg1 : i32
    %c0_i32 = arith.constant 0 : i32
    %2 = arith.minsi %1, %c0_i32 : i32
    %c0_i32_0 = arith.constant 0 : i32
    %c0_i32_1 = arith.constant 0 : i32
    return %2, %c0_i32_0 : i32, i32
  }
  func.func @transform_1(%arg0: i32, %arg1: i32) -> (i32, i32) {
    %c1_i32 = arith.constant 1 : i32
    %0 = arith.muli %arg0, %c1_i32 : i32
    %1 = arith.addi %0, %arg1 : i32
    %c0_i32 = arith.constant 0 : i32
    %2 = arith.minsi %1, %c0_i32 : i32
    %c0_i32_0 = arith.constant 0 : i32
    %c0_i32_1 = arith.constant 0 : i32
    return %2, %c0_i32_0 : i32, i32
  }
  func.func @transform_2(%arg0: i32, %arg1: i32) -> (i32, i32, i32, i32) {
    %c0_i32 = arith.constant 0 : i32
    %c0_i32_0 = arith.constant 0 : i32
    %c0_i32_1 = arith.constant 0 : i32
    %c0_i32_2 = arith.constant 0 : i32
    return %arg0, %c0_i32, %c0_i32_0, %c0_i32_1 : i32, i32, i32, i32
  }
}

</mosaic_0001>

<llo_original>
// kernel: tpu_custom_call.1
$region0: #{tpu_custom_call.1}
  #allocation0 [shape = 'u32[]', space=smem, size = 0x4, offset = 0x4, fixed_abs, tag = 'smem constant byte address 0x4 - core index']
  #allocation1 [shape = 'u32[72,128]{1,0:T(1,128)}', space=vmem, size = 0x9000, scoped, tag = 'internal scratch']
  %s0 = inlined_call_operand.hbm [shape: f32[16,128], index: 0, kind: input, shape index: {}]
  %s1 = inlined_call_operand.hbm [shape: f32[16,128], index: 1, kind: input, shape index: {}]
  %s2 = inlined_call_operand.hbm [shape: f32[1,4,8,128], index: 2, kind: output, shape index: {}]
  %s3 = sld [smem:[#allocation0]]
  $region30: #{tpu_custom_call.1} parent=0
    _
  %s5 = ssub.s32 1, %s3
  %s6 = scalar_select 0, %s5, %s3
  $region1: #{tpu_custom_call.1} parent=0
    #allocation2 [shape = 'u8[8192]{0}', space=vmem, size = 0x2000, scoped, tag = 'input window, operand 0, single buffered']
    #allocation3 [shape = 's32[1]{0}', space=sflag, size = 0x4, scoped, tag = 'scoped memory for tpu_custom_call.1']
    #allocation4 [shape = 's32[1]{0}', space=sflag, size = 0x4, scoped, tag = 'scoped memory for tpu_custom_call.1']
    #allocation5 [shape = 'u8[8192]{0}', space=vmem, size = 0x2000, scoped, tag = 'input window, operand 1, single buffered']
    #allocation6 [shape = 's32[1]{0}', space=sflag, size = 0x4, scoped, tag = 'scoped memory for tpu_custom_call.1']
    #allocation7 [shape = 'u8[16384]{0}', space=vmem, size = 0x4000, scoped, tag = 'output window, operand 0, single buffered']
    %7 = vsyncpa [#allocation3], 0
    %8 = vsyncpa [#allocation6], 0
    %9 = vsyncpa [#allocation4], 0
    // Predicated region
    $region2: #{tpu_custom_call.1} parent=1 // pred_check
      _
    $region3: #{tpu_custom_call.1} parent=1 // pred_check_branch
      %11 = sbr.rel (0) target = $region5
    $region4: #{tpu_custom_call.1} parent=1 // pred_region
      %s12 = sadd.s32 0, 0
      %p13 = scmp.lt.s32.totalorder %s12, 0
      %s14 = scalar_select %p13, %s12, 0
      %s15 = smul.u32 2, %s14
      %17 = vsyncadd [#allocation3], 0
      %s18 = smul.addr %s15, 8
      %s19 = scalar_lea.hbm %s0, %s18
      %s20 = sshll.u32 %s19, 4
      %s21 = int_to_ptr.hbm [resolvable:$true] %s20
      %s22 = sshll.u32 [#allocation2], 4
      %s23 = int_to_ptr.vmem [resolvable:$true] %s22
      %28 = dma.hbm_to_vmem [thread:$0]  %s21, 256, %s23, [#allocation3], 128, 128, 8
    $region5: #{tpu_custom_call.1} parent=1 // pred_fallthru
      _
    // Predicated region
    $region6: #{tpu_custom_call.1} parent=1 // pred_check
      _
    $region7: #{tpu_custom_call.1} parent=1 // pred_check_branch
      %30 = sbr.rel (0) target = $region9
    $region8: #{tpu_custom_call.1} parent=1 // pred_region
      %s31 = sadd.s32 0, 0
      %p32 = scmp.lt.s32.totalorder %s31, 0
      %s33 = scalar_select %p32, %s31, 0
      %s34 = smul.u32 2, %s33
      %36 = vsyncadd [#allocation6], 0
      %s37 = smul.addr %s34, 8
      %s38 = scalar_lea.hbm %s1, %s37
      %s39 = sshll.u32 %s38, 4
      %s40 = int_to_ptr.hbm [resolvable:$true] %s39
      %s41 = sshll.u32 [#allocation5], 4
      %s42 = int_to_ptr.vmem [resolvable:$true] %s41
      %47 = dma.hbm_to_vmem [thread:$0]  %s40, 256, %s42, [#allocation6], 128, 128, 8
    $region9: #{tpu_custom_call.1} parent=1 // pred_fallthru
      _
    // Predicated region
    $region10: #{tpu_custom_call.1} parent=1 // pred_check
      _
    $region11: #{tpu_custom_call.1} parent=1 // pred_check_branch
      %49 = sbr.rel (0) target = $region13
    $region12: #{tpu_custom_call.1} parent=1 // pred_region
      %51 = dma.done [#allocation3], 256
    $region13: #{tpu_custom_call.1} parent=1 // pred_fallthru
      _
    // Predicated region
    $region14: #{tpu_custom_call.1} parent=1 // pred_check
      _
    $region15: #{tpu_custom_call.1} parent=1 // pred_check_branch
      %53 = sbr.rel (0) target = $region17
    $region16: #{tpu_custom_call.1} parent=1 // pred_region
      %55 = dma.done [#allocation6], 256
    $region17: #{tpu_custom_call.1} parent=1 // pred_fallthru
      _
    %s56 = sadd.s32 0, 0
    %p57 = scmp.lt.s32.totalorder %s56, 0
    %s58 = scalar_select %p57, %s56, 0
    %s59 = smul.u32 2, %s58
    %s60 = sadd.s32 0, 0
    %p61 = scmp.lt.s32.totalorder %s60, 0
    %s62 = scalar_select %p61, %s60, 0
    %s63 = smul.u32 2, %s62
    %p64 = scmp.eq.s32.totalorder 0, 0
    // Predicated region
    $region18: #{tpu_custom_call.1} parent=1 // pred_check
      %p65 = pneg %p64
    $region19: #{tpu_custom_call.1} parent=1 // pred_check_branch
      %67 = sbr.rel (%p65) target = $region21
    $region20: #{tpu_custom_call.1} parent=1 // pred_region
      %68 = vst [vmem:[#allocation7] sm:$0xff] 0.0
      %69 = vst [vmem:[#allocation7 + $0x8] sm:$0xff] 0.0
      %70 = vst [vmem:[#allocation7 + $0x10] sm:$0xff] 0.0
      %71 = vst [vmem:[#allocation7 + $0x18] sm:$0xff] 0.0
    $region21: #{tpu_custom_call.1} parent=1 // pred_fallthru
      _
    %v72 = vld [vmem:[#allocation2] sm:$0xff]
    %v73 = vld [vmem:[#allocation2 + $0x8] sm:$0xff]
    %v74 = vld [vmem:[#allocation5] sm:$0xff]
    %v75 = vld [vmem:[#allocation5 + $0x8] sm:$0xff]
    %vm76 = vcmp.eq.f32.partialorder %v74, 1.0
    %vm77 = vcmp.eq.f32.partialorder %v75, 1.0
    %vm78 = vcmp.eq.f32.partialorder %v74, 0.0
    %vm79 = vcmp.eq.f32.partialorder %v75, 0.0
    %v80 = vsel %vm76, 1, 0
    %v81 = vsel %vm77, 1, 0
    %v82 = vcvt.s32.f32 %v80
    %v83 = vcvt.s32.f32 %v81
    %v84 = vsel %vm78, 1, 0
    %v85 = vsel %vm79, 1, 0
    %v86 = vcvt.s32.f32 %v84
    %v87 = vcvt.s32.f32 %v85
    %v88 = vmax.f32 %v72, -13.81551
    %v89 = vmax.f32 %v73, -13.81551
    %v90 = vmin.f32 %v88, 13.81551
    %v91 = vmin.f32 %v89, 13.81551
    %v92 = vand.u32 2147483647, %v90
    %v93 = vand.u32 2147483647, %v91
    %v94 = vsub.f32 0.0, %v92
    %v95 = vsub.f32 0.0, %v93
    %v96 = vmul.f32 %v94, 1.442695
    %v97 = vpow.pop %v96
    %v98 = vmul.f32 %v95, 1.442695
    %v99 = vpow.pop %v98
    %v100 = vadd.f32 %v97, 1.0
    %v101 = vadd.f32 %v99, 1.0
    %v102 = vmin.f32 %v90, 0.0
    %v103 = vmin.f32 %v91, 0.0
    %v104 = vlog2.pop %v100
    %v105 = vmul.f32 %v104, 0.6931472
    %v106 = vlog2.pop %v101
    %v107 = vmul.f32 %v106, 0.6931472
    %v108 = vsub.f32 %v102, %v105
    %v109 = vsub.f32 %v103, %v107
    %v110 = vsub.f32 %v108, %v90
    %v111 = vsub.f32 %v109, %v91
    %v112 = vrcp.pop %v100
    %v113 = vrcp.pop %v101
    %vm114 = vcmp.ge.f32.partialorder %v90, 0.0
    %vm115 = vcmp.ge.f32.partialorder %v91, 0.0
    %v116 = vmul.f32 %v97, %v112
    %v117 = vmul.f32 %v99, %v113
    %v118 = vsel %vm114, %v112, %v116
    %v119 = vsel %vm115, %v113, %v117
    %v120 = vsub.f32 1.0, %v118
    %v121 = vsub.f32 1.0, %v119
    %v122 = vmul.f32 %v120, %v120
    %v123 = vmul.f32 %v121, %v121
    %v124 = vmul.f32 %v118, %v118
    %v125 = vmul.f32 %v119, %v119
    %v126 = vld [vmem:[#allocation7] sm:$0xff]
    %v127 = vmul.f32 %v122, %v108
    %v128 = vmul.f32 %v123, %v109
    %v129 = vmul.f32 %v127, %v82
    %v130 = vmul.f32 %v128, %v83
    %v131 = vadd.f32 %v129, %v130
    %v132 = vadd.f32 %v126, %v131
    %133 = vst [vmem:[#allocation7] sm:$0xff] %v132
    %s134 = scalar_lea.vmem [#allocation7], 8
    %v135 = vld [vmem:[%s134] sm:$0xff]
    %v136 = vmul.f32 %v124, %v110
    %v137 = vmul.f32 %v125, %v111
    %v138 = vmul.f32 %v136, %v86
    %v139 = vmul.f32 %v137, %v87
    %v140 = vadd.f32 %v138, %v139
    %v141 = vadd.f32 %v135, %v140
    %142 = vst [vmem:[%s134] sm:$0xff] %v141
    %s143 = scalar_lea.vmem [#allocation7], 16
    %v144 = vld [vmem:[%s143] sm:$0xff]
    %v145 = vadd.f32 %v82, %v83
    %v146 = vadd.f32 %v144, %v145
    %147 = vst [vmem:[%s143] sm:$0xff] %v146
    %s148 = scalar_lea.vmem [#allocation7], 24
    %v149 = vld [vmem:[%s148] sm:$0xff]
    %v150 = vadd.f32 %v86, %v87
    %v151 = vadd.f32 %v149, %v150
    %152 = vst [vmem:[%s148] sm:$0xff] %v151
    // Predicated region
    $region22: #{tpu_custom_call.1} parent=1 // pred_check
      _
    $region23: #{tpu_custom_call.1} parent=1 // pred_check_branch
      %154 = sbr.rel (0) target = $region25
    $region24: #{tpu_custom_call.1} parent=1 // pred_region
      %156 = vsyncadd [#allocation4], 0
      %s157 = sshll.u32 [#allocation7], 4
      %s158 = int_to_ptr.vmem [resolvable:$true] %s157
      %s159 = sshll.u32 %s2, 4
      %s160 = int_to_ptr.hbm [resolvable:$true] %s159
      %165 = dma.vmem_to_hbm [thread:$0]  %s158, 512, %s160, [#allocation4], 128, 128, 8
    $region25: #{tpu_custom_call.1} parent=1 // pred_fallthru
      _
    // Predicated region
    $region26: #{tpu_custom_call.1} parent=1 // pred_check
      _
    $region27: #{tpu_custom_call.1} parent=1 // pred_check_branch
      %167 = sbr.rel (0) target = $region29
    $region28: #{tpu_custom_call.1} parent=1 // pred_region
      %169 = dma.done [#allocation4], 512
    $region29: #{tpu_custom_call.1} parent=1 // pred_fallthru
      _
    %170 = vsyncpa [#allocation3], 1
    %171 = vsyncpa [#allocation6], 1
    %172 = vsyncpa [#allocation4], 1

</llo_original>
